<compile_context>
chip_gen: v7x
topology: tpu7x:2x2x1
jax: 0.10.0
libtpu: 0.0.40
codegen_flags: <defaults>
</compile_context>

<pallas_src>
import jax
import jax.numpy as jnp
from jax.experimental import pallas as pl
from jax.experimental.pallas import tpu as pltpu


def _lane_dense_cols(total: int, max_cols: int = 4096) -> int:
    """Largest multiple-of-128 divisor of `total` that is <= max_cols (0 if none).

    Only used to define row-aligned chunk boundaries for the DMAs (DMA perf
    does not depend on lane density); keeping cols moderate leaves enough rows
    on large tensors to fan the copy out over several DMA queues.
    """
    for k in range(max_cols // 128, 0, -1):
        c = k * 128
        if total % c == 0:
            return c
    return 0


def _chunk_rows(rows: int, row_bytes: int, max_chunks: int, min_chunk_bytes: int):
    """Split `rows` into at most `max_chunks` contiguous row ranges.

    Chunks are only created when each chunk moves >= min_chunk_bytes, so small
    copies stay a single DMA while large copies use several DMA queues in
    parallel.  Returns a list of static (start_row, num_rows) Python ints.
    """
    total_bytes = rows * row_bytes
    n = max(1, min(max_chunks, rows, total_bytes // max(min_chunk_bytes, 1)))
    per = pl.cdiv(rows, n)
    chunks = []
    start = 0
    while start < rows:
        size = min(per, rows - start)
        chunks.append((start, size))
        start += size
    return chunks


def _make_dma_copy_kernel(chunks):
    """HBM->HBM chunked async-copy kernel: no VMEM staging, no vreg traffic."""

    def kernel(x_hbm, o_hbm, sems):
        copies = []
        # Issue every chunk DMA first so they are all in flight concurrently.
        for i, (start, size) in enumerate(chunks):
            cp = pltpu.make_async_copy(
                x_hbm.at[pl.ds(start, size)],
                o_hbm.at[pl.ds(start, size)],
                sems.at[i],
            )
            cp.start()
            copies.append(cp)
        # Then block until every chunk has landed.
        for cp in copies:
            cp.wait()

    return kernel


def identity_copy_pallas(
    x: jax.Array,
    *,
    max_chunks: int = 8,
    min_chunk_bytes: int = 1 << 20,
    max_cols: int = 4096,
) -> jax.Array:
    """Materialized identity copy via direct HBM->HBM DMA (no VMEM round trip)."""
    if x.size == 0:
        return x

    orig_shape = x.shape
    dtype = x.dtype
    itemsize = jnp.dtype(dtype).itemsize
    total = x.size

    # 2-D view used purely to define row-aligned chunk boundaries.
    cols = _lane_dense_cols(total, max_cols)
    if cols:
        rows = total // cols
    else:
        # No multiple-of-128 factor: one whole-array DMA. Since nothing goes
        # through VMEM there is no OOM risk regardless of size.
        rows, cols = 1, total
    x2 = x.reshape(rows, cols)

    chunks = _chunk_rows(rows, cols * itemsize, max_chunks, min_chunk_bytes)
    kernel = _make_dma_copy_kernel(chunks)

    out2 = pl.pallas_call(
        kernel,
        out_shape=jax.ShapeDtypeStruct((rows, cols), dtype),
        in_specs=[pl.BlockSpec(memory_space=pl.ANY)],   # raw HBM ref, no auto-DMA
        out_specs=pl.BlockSpec(memory_space=pl.ANY),    # raw HBM ref, written by DMA
        scratch_shapes=[pltpu.SemaphoreType.DMA((len(chunks),))],
        # Pure mem-bound streaming op: tell XLA so neighbors overlap around it.
        cost_estimate=pl.CostEstimate(
            flops=0, transcendentals=0, bytes_accessed=2 * total * itemsize
        ),
    )(x2)

    return out2.reshape(orig_shape)


def identity_map(x: jax.Array, *args, materialize: bool = False, **kwargs) -> jax.Array:
    """Equivalent of IdentityMap.forward(x, *args, **kwargs) -> x.

    Default is a zero-cost passthrough (true identity semantics).  Set
    materialize=True to force a physical copy through the DMA kernel.
    """
    if not materialize:
        return x
    return identity_copy_pallas(x)


# Equivalent of the `config` property (module has no parameters).
IDENTITY_MAP_CONFIG = {"mm_projector_type": "identity"}


if __name__ == "__main__":
    key = jax.random.PRNGKey(0)
    # Token-feature shape consistent with a projector input: (seq, hidden).
    x = jax.random.normal(key, (8, 32), dtype=jnp.float32)

    # Fast path: true IdentityMap semantics — zero-cost passthrough.
    y_fast = identity_map(x)
    assert y_fast is x

    # Single-chunk HBM->HBM DMA copy (total=256 -> lane-dense (1, 256) view).
    y = jax.block_until_ready(identity_map(x, materialize=True))
    assert y.shape == x.shape and y.dtype == x.dtype
    assert bool(jnp.array_equal(y, x))

    # Non-factorable (no multiple-of-128 divisor) + sub-32-bit dtype path:
    # whole-array single DMA, shape/dtype preserved.
    xb = jax.random.normal(jax.random.PRNGKey(0), (2, 7, 96), dtype=jnp.bfloat16)
    yb = jax.block_until_ready(identity_copy_pallas(xb))
    assert yb.shape == xb.shape and yb.dtype == xb.dtype
    assert bool(jnp.array_equal(yb, xb))

    # Exercise the multi-chunk (parallel DMA queues) path at small scale by
    # shrinking the chunk-size threshold: (8, 256) f32 -> (8, 256) view, 8 chunks.
    xc = jax.random.normal(jax.random.PRNGKey(0), (8, 256), dtype=jnp.float32)
    yc = jax.block_until_ready(
        identity_copy_pallas(xc, max_chunks=8, min_chunk_bytes=1024, max_cols=256)
    )
    assert yc.shape == xc.shape and yc.dtype == xc.dtype
    assert bool(jnp.array_equal(yc, xc))

    print("KERNEL_OK")
</pallas_src>

<mosaic_0001>
module attributes {stable_mosaic.version = 11 : i64} {
  func.func @kernel(%arg0: memref<1x256xf32, #tpu.memory_space<any>>, %arg1: memref<1x256xf32, #tpu.memory_space<any>>, %arg2: memref<1x!tpu.dma_semaphore, #tpu.memory_space<semaphore_mem>>) attributes {dimension_semantics = [], scalar_prefetch = 0 : i64, scratch_operands = 1 : i64, tpu.core_type = #tpu.core_type<tc>} {
    %c0_i32 = arith.constant 0 : i32
    %c0_i32_0 = arith.constant 0 : i32
    %c0_i32_1 = arith.constant 0 : i32
    %0 = tpu.memref_slice %arg0[%c0_i32_0, %c0_i32_1] : memref<1x256xf32, #tpu.memory_space<any>> -> memref<1x256xf32, #tpu.memory_space<any>>
    %c0_i32_2 = arith.constant 0 : i32
    %c0_i32_3 = arith.constant 0 : i32
    %1 = tpu.memref_slice %arg1[%c0_i32_2, %c0_i32_3] : memref<1x256xf32, #tpu.memory_space<any>> -> memref<1x256xf32, #tpu.memory_space<any>>
    %2 = tpu.memref_slice %arg2[%c0_i32] : memref<1x!tpu.dma_semaphore, #tpu.memory_space<semaphore_mem>> -> memref<1x!tpu.dma_semaphore, #tpu.memory_space<semaphore_mem>>
    %3 = tpu.memref_squeeze %2 : memref<1x!tpu.dma_semaphore, #tpu.memory_space<semaphore_mem>> -> memref<!tpu.dma_semaphore, #tpu.memory_space<semaphore_mem>>
    tpu.enqueue_dma source(%0 : memref<1x256xf32, #tpu.memory_space<any>>) target(%1 : memref<1x256xf32, #tpu.memory_space<any>>) target_semaphore(%3 : memref<!tpu.dma_semaphore, #tpu.memory_space<semaphore_mem>>)
    %c0_i32_4 = arith.constant 0 : i32
    %c0_i32_5 = arith.constant 0 : i32
    %c0_i32_6 = arith.constant 0 : i32
    %4 = tpu.memref_slice %arg0[%c0_i32_5, %c0_i32_6] : memref<1x256xf32, #tpu.memory_space<any>> -> memref<1x256xf32, #tpu.memory_space<any>>
    %c0_i32_7 = arith.constant 0 : i32
    %c0_i32_8 = arith.constant 0 : i32
    %5 = tpu.memref_slice %arg1[%c0_i32_7, %c0_i32_8] : memref<1x256xf32, #tpu.memory_space<any>> -> memref<1x256xf32, #tpu.memory_space<any>>
    %6 = tpu.memref_slice %arg2[%c0_i32_4] : memref<1x!tpu.dma_semaphore, #tpu.memory_space<semaphore_mem>> -> memref<1x!tpu.dma_semaphore, #tpu.memory_space<semaphore_mem>>
    %7 = tpu.memref_squeeze %6 : memref<1x!tpu.dma_semaphore, #tpu.memory_space<semaphore_mem>> -> memref<!tpu.dma_semaphore, #tpu.memory_space<semaphore_mem>>
    tpu.wait_dma2 semaphore(%7 : memref<!tpu.dma_semaphore, #tpu.memory_space<semaphore_mem>>) src(%4 : memref<1x256xf32, #tpu.memory_space<any>>) dst(%5 : memref<1x256xf32, #tpu.memory_space<any>>)
    return
  }
}

</mosaic_0001>

<llo_original>
// kernel: tpu_custom_call.1
$region0: #{tpu_custom_call.1}
  #allocation0 [shape = 'u32[]', space=smem, size = 0x4, offset = 0x4, fixed_abs, tag = 'smem constant byte address 0x4 - core index']
  #allocation1 [shape = 'u32[144,128]{1,0:T(1,128)}', space=vmem, size = 0x12000, scoped, tag = 'internal scratch']
  #allocation2 [shape = 's32[1]{0}', space=sflag, size = 0x4, scoped, tag = 'scratch operand']
  #allocation3 [shape = 's32[]', space=sflag, size = 0x4, offset = 0, fixed_abs, tag = 'sflag constant byte address 0x0 - dummy sync flag']
  #allocation4 [shape = 'u32[0]{0}', space=smem, size = 0, offset = 0, fixed_abs, tag = 'smem constant byte address 0x0 - null']
  %s0 = inlined_call_operand.hbm [shape: f32[1,256], index: 0, kind: input, shape index: {}]
  %s1 = inlined_call_operand.hbm [shape: f32[1,256], index: 1, kind: output, shape index: {}]
  %s2 = sld [smem:[#allocation0]]
  $region2: #{tpu_custom_call.1} parent=0
    _
  %s4 = ssub.s32 1, %s2
  %s5 = scalar_select 0, %s4, %s2
  %s7 = sshll.u32 1, 14
  %s8 = sxor.u32 4294967295, %s7
  %s11 = sshll.u32 3, 24
  %s12 = sxor.u32 4294967295, %s11
  %s13 = sand.u32 0, %s12
  %s15 = sor.u32 %s13, 0
  %18 = dma.general %s0, 32, %s1, [#allocation2], [#allocation3], [#allocation4], %s15, 0
  %s19 = smul.u32 1, 2
  %s20 = sshll.u32 %s19, 4
  %21 = dma.done [#allocation2], %s20
  %22 = vsyncmov [#allocation2]
  %s23 = vpop.sfrf %22
  %p24 = scmp.eq.s32.totalorder %s23, 0
  %p25 = pneg %p24
  %27 = shalt.err (%p25)

</llo_original>
